<compile_context>
chip_gen: v5e
topology: v5e:2x2
jax: 0.10.0
libtpu: 0.0.40
codegen_flags: <defaults>
</compile_context>

<pallas_src>
import math
from functools import partial

import jax
import jax.numpy as jnp
from jax import lax
from jax.experimental import pallas as pl
from jax.experimental.pallas import tpu as pltpu


def _round_up(x, m):
    return ((x + m - 1) // m) * m


def _tpu_generation():
    try:
        kind = jax.devices()[0].device_kind.lower()
    except Exception:
        return 0
    for g in (7, 6, 5, 4, 3):
        if f"v{g}" in kind:
            return g
    return 0


_GEN = _tpu_generation()
# v6e / v7x EUP supports bf16 exp; v5e does not (keep softmax math f32 there).
_EXP_DTYPE = jnp.bfloat16 if _GEN >= 6 else jnp.float32
# v7x has 64 MiB physical VMEM -> cap at 48 MiB; v5e/v6e have 128 MiB -> 64 MiB.
_VMEM_LIMIT_BYTES = (64 if _GEN in (5, 6) else 48) * 1024 * 1024


# ---------------------------------------------------------------------------
# Linear projection kernels (nn.Linear(bias=False)): bf16 MXU operands,
# f32 accumulate.  Full-K single pass when K fits VMEM (no accumulator RMW,
# no reduction grid axis); K-tiled reduction fallback for very large K.
# ---------------------------------------------------------------------------

def _matmul_kernel_full_k(x_ref, w_ref, o_ref):
    o_ref[...] = jnp.dot(x_ref[...], w_ref[...],
                         preferred_element_type=jnp.float32).astype(o_ref.dtype)


def _matmul_kernel_red_k(x_ref, w_ref, o_ref, acc_ref):
    @pl.when(pl.program_id(2) == 0)
    def _init():
        acc_ref[...] = jnp.zeros_like(acc_ref)

    acc_ref[...] += jnp.dot(x_ref[...], w_ref[...],
                            preferred_element_type=jnp.float32)

    @pl.when(pl.program_id(2) == pl.num_programs(2) - 1)
    def _finalize():
        o_ref[...] = acc_ref[...].astype(o_ref.dtype)


def pallas_linear(x, w, *, out_dtype=None, tm=512, tn=512, full_k_max=4096, tk=1024):
    """x: (M, K), w: (K, N) -> (M, N)."""
    M, K = x.shape
    K2, N = w.shape
    assert K == K2
    out_dtype = x.dtype if out_dtype is None else out_dtype

    xb = x.astype(jnp.bfloat16)
    wb = w.astype(jnp.bfloat16)

    # Use the full dim as the tile when it fits: no padding, no output slice.
    if M <= tm:
        tm_, Mp = M, M
    else:
        tm_, Mp = tm, _round_up(M, tm)
    if N <= tn:
        tn_, Np = N, N
    else:
        tn_, Np = tn, _round_up(N, tn)

    if K <= full_k_max:
        if Mp != M:
            xb = jnp.pad(xb, ((0, Mp - M), (0, 0)))
        if Np != N:
            wb = jnp.pad(wb, ((0, 0), (0, Np - N)))
        out = pl.pallas_call(
            _matmul_kernel_full_k,
            out_shape=jax.ShapeDtypeStruct((Mp, Np), out_dtype),
            grid_spec=pltpu.PrefetchScalarGridSpec(
                num_scalar_prefetch=0,
                grid=(Mp // tm_, Np // tn_),
                in_specs=[
                    pl.BlockSpec((tm_, K), lambda i, j: (i, 0)),
                    pl.BlockSpec((K, tn_), lambda i, j: (0, j)),
                ],
                out_specs=pl.BlockSpec((tm_, tn_), lambda i, j: (i, j)),
            ),
            compiler_params=pltpu.CompilerParams(
                dimension_semantics=("parallel", "parallel"),
                vmem_limit_bytes=_VMEM_LIMIT_BYTES,
            ),
        )(xb, wb)
    else:
        tk_ = tk
        Kp = _round_up(K, tk_)
        if (Mp, Kp) != (M, K):
            xb = jnp.pad(xb, ((0, Mp - M), (0, Kp - K)))
        if (Kp, Np) != (K, N):
            wb = jnp.pad(wb, ((0, Kp - K), (0, Np - N)))
        out = pl.pallas_call(
            _matmul_kernel_red_k,
            out_shape=jax.ShapeDtypeStruct((Mp, Np), out_dtype),
            grid_spec=pltpu.PrefetchScalarGridSpec(
                num_scalar_prefetch=0,
                grid=(Mp // tm_, Np // tn_, Kp // tk_),
                in_specs=[
                    pl.BlockSpec((tm_, tk_), lambda i, j, k: (i, k)),
                    pl.BlockSpec((tk_, tn_), lambda i, j, k: (k, j)),
                ],
                out_specs=pl.BlockSpec((tm_, tn_), lambda i, j, k: (i, j)),
                scratch_shapes=[pltpu.VMEM((tm_, tn_), jnp.float32)],
            ),
            compiler_params=pltpu.CompilerParams(
                dimension_semantics=("parallel", "parallel", "arbitrary"),
                vmem_limit_bytes=_VMEM_LIMIT_BYTES,
            ),
        )(xb, wb)

    if (Mp, Np) != (M, N):
        out = out[:M, :N]
    return out


# ---------------------------------------------------------------------------
# Flash / online-softmax attention kernel.
#   grid = (B, Nq tiles, Nk tiles), Nk axis is the reduction ("arbitrary").
#   Heads stay fused in the lane dim of q / kv / o (no HBM transposes);
#   running m / l / acc scratch is HEAD-MAJOR so every per-head update is a
#   full-tile VMEM access.  Softmax bookkeeping (m, alpha, row-sum) in f32;
#   exp argument in bf16 on v6e/v7x; MXU operands bf16, f32 accumulate.
# ---------------------------------------------------------------------------

def _flash_attn_kernel(q_ref, kv_ref, o_ref, m_ref, l_ref, acc_ref, *,
                       heads, dim_head, scale, block_k, kv_len, needs_mask,
                       exp_dtype):
    ki = pl.program_id(2)
    HD = heads * dim_head

    @pl.when(ki == 0)
    def _init():
        m_ref[...] = jnp.full_like(m_ref, -jnp.inf)
        l_ref[...] = jnp.zeros_like(l_ref)
        acc_ref[...] = jnp.zeros_like(acc_ref)

    q_all = q_ref[0]      # (tq, H*Dh)    bf16
    kv_all = kv_ref[0]    # (tk, 2*H*Dh)  bf16

    if needs_mask:
        # Padding only exists in the last kv tile (wrapper guarantees >=1 valid
        # key per tile).  One (1, tk) iota + compare per grid step; cheap
        # additive bias per head instead of a full select.
        col = ki * block_k + lax.broadcasted_iota(
            jnp.int32, (1, kv_all.shape[0]), 1)
        bias = jnp.where(col < kv_len, 0.0, -1e30).astype(jnp.float32)

    for h in range(heads):
        c0, c1 = h * dim_head, (h + 1) * dim_head
        q_h = q_all[:, c0:c1]                 # (tq, Dh) bf16
        k_h = kv_all[:, c0:c1]                # (tk, Dh) bf16
        v_h = kv_all[:, HD + c0:HD + c1]      # (tk, Dh) bf16

        # Contract the last dim of both operands: no XLU transpose of K.
        s = lax.dot_general(q_h, k_h, (((1,), (1,)), ((), ())),
                            preferred_element_type=jnp.float32) * scale
        if needs_mask:
            s = s + bias

        m_prev = m_ref[h]                                            # (tq, 1) f32
        m_new = jnp.maximum(m_prev, jnp.max(s, axis=-1, keepdims=True))
        alpha = jnp.exp(m_prev - m_new)                              # f32
        p = jnp.exp((s - m_new).astype(exp_dtype))                   # bf16 on v6e/v7x
        l_ref[h] = alpha * l_ref[h] + jnp.sum(
            p.astype(jnp.float32), axis=-1, keepdims=True)
        pv = jnp.dot(p.astype(v_h.dtype), v_h,
                     preferred_element_type=jnp.float32)             # (tq, Dh)
        acc_ref[h] = alpha * acc_ref[h] + pv
        m_ref[h] = m_new

    @pl.when(ki == pl.num_programs(2) - 1)
    def _finalize():
        # Epilogue-only: per-head scale + store into the lane-dense output tile.
        for h in range(heads):
            c0, c1 = h * dim_head, (h + 1) * dim_head
            inv = pl.reciprocal(l_ref[h], approx=True)               # EUP slot
            o_ref[0, :, c0:c1] = (acc_ref[h] * inv).astype(o_ref.dtype)


def pallas_flash_attention(q, kv, *, heads, dim_head, scale,
                           block_q=512, block_k=512):
    """q: (B, Nq, H*Dh), kv: (B, Nk, 2*H*Dh) -> (B, Nq, H*Dh)."""
    B, Nq, HD = q.shape
    _, Nk, HD2 = kv.shape
    assert HD == heads * dim_head and HD2 == 2 * HD

    # Full dim as the tile when it fits -> no padding / no mask / no out slice.
    if Nq <= block_q:
        tq, Nqp = Nq, Nq
    else:
        tq, Nqp = block_q, _round_up(Nq, block_q)
        if Nqp != Nq:
            q = jnp.pad(q, ((0, 0), (0, Nqp - Nq), (0, 0)))
    if Nk <= block_k:
        tk, Nkp = Nk, Nk
    else:
        tk, Nkp = block_k, _round_up(Nk, block_k)
        if Nkp != Nk:
            kv = jnp.pad(kv, ((0, 0), (0, Nkp - Nk), (0, 0)))
    needs_mask = (Nkp != Nk)

    grid = (B, Nqp // tq, Nkp // tk)
    kernel = partial(_flash_attn_kernel, heads=heads, dim_head=dim_head,
                     scale=scale, block_k=tk, kv_len=Nk,
                     needs_mask=needs_mask, exp_dtype=_EXP_DTYPE)

    kv_index_map = lambda b, qi, ki: (b, ki, 0)
    if _GEN == 5:
        # v5e is the most DMA-exposed: third kv buffer hides the stream.
        kv_spec = pl.BlockSpec((1, tk, 2 * HD), kv_index_map,
                               pipeline_mode=pl.Buffered(3))
    else:
        kv_spec = pl.BlockSpec((1, tk, 2 * HD), kv_index_map)

    out = pl.pallas_call(
        kernel,
        out_shape=jax.ShapeDtypeStruct((B, Nqp, HD), q.dtype),
        grid_spec=pltpu.PrefetchScalarGridSpec(
            num_scalar_prefetch=0,
            grid=grid,
            in_specs=[
                pl.BlockSpec((1, tq, HD), lambda b, qi, ki: (b, qi, 0)),
                kv_spec,
            ],
            out_specs=pl.BlockSpec((1, tq, HD), lambda b, qi, ki: (b, qi, 0)),
            scratch_shapes=[
                pltpu.VMEM((heads, tq, 1), jnp.float32),         # running max  m
                pltpu.VMEM((heads, tq, 1), jnp.float32),         # running sum  l
                pltpu.VMEM((heads, tq, dim_head), jnp.float32),  # accumulator
            ],
        ),
        compiler_params=pltpu.CompilerParams(
            dimension_semantics=("parallel", "parallel", "arbitrary"),
            vmem_limit_bytes=_VMEM_LIMIT_BYTES,
        ),
    )(q, kv)
    if Nqp != Nq:
        out = out[:, :Nq, :]
    return out


# ---------------------------------------------------------------------------
# Module-equivalent forward
# ---------------------------------------------------------------------------

class AttentionParams:
    """Deterministically-initialized weights matching the PyTorch module shapes."""

    def __init__(self, key, dim, dim_context=None, dim_head=64, heads=8):
        dim_context = dim if dim_context is None else dim_context
        dim_inner = dim_head * heads
        k1, k2, k3 = jax.random.split(key, 3)

        def init(k, fan_in, fan_out):
            bound = 1.0 / math.sqrt(fan_in)
            return jax.random.uniform(
                k, (fan_in, fan_out), jnp.float32, -bound, bound)

        # stored as (in_features, out_features) so forward is x @ W
        self.w_q = init(k1, dim, dim_inner)
        self.w_kv = init(k2, dim_context, dim_inner * 2)
        self.w_out = init(k3, dim_inner, dim)
        self.heads = heads
        self.dim_head = dim_head
        self.scale = dim_head ** (-0.5)


def attention_forward(params, x, context=None, cross_attn_include_queries=False):
    """x: (B, N, D); context: (B, M, Dc) or None. Returns (B, N, D)."""
    # TODO(synk): attention mask, causal masking and dropout are not implemented
    # (module defaults mask=None, causal=False, dropout=0.0 are reproduced).
    h, d = params.heads, params.dim_head
    HD = h * d
    has_context = context is not None
    ctx = x if context is None else context
    if has_context and cross_attn_include_queries:
        ctx = jnp.concatenate((x, ctx), axis=-2)

    B, N, D = x.shape
    _, M, Dc = ctx.shape

    # Two separate projections (no fused-then-slice qkv, no per-call weight
    # concat): avoids an extra full HBM read+write pass over the projections.
    q = pallas_linear(x.reshape(B * N, D), params.w_q,
                      out_dtype=jnp.bfloat16).reshape(B, N, HD)
    kv = pallas_linear(ctx.reshape(B * M, Dc), params.w_kv,
                       out_dtype=jnp.bfloat16).reshape(B, M, 2 * HD)

    # heads stay fused in the lane dim -> no HBM transposes, lane-dense output
    o = pallas_flash_attention(q, kv, heads=h, dim_head=d, scale=params.scale)

    out = pallas_linear(o.reshape(B * N, HD), params.w_out, out_dtype=x.dtype)
    return out.reshape(B, N, D)


# ---------------------------------------------------------------------------
# Reference (plain JAX) mirroring the bf16 matmul operands and the kernel's
# exp dtype for a tight numerical check.
# ---------------------------------------------------------------------------

def reference_forward(params, x, context=None, cross_attn_include_queries=False,
                      exp_dtype=jnp.float32):
    bf, f32 = jnp.bfloat16, jnp.float32
    h, d = params.heads, params.dim_head
    has_context = context is not None
    ctx = x if context is None else context
    if has_context and cross_attn_include_queries:
        ctx = jnp.concatenate((x, ctx), axis=-2)
    B, N, _ = x.shape
    _, M, _ = ctx.shape

    def mm(a, b):   # bf16 operands, f32 accumulate (same math as the kernels)
        return jnp.dot(a.astype(bf).astype(f32), b.astype(bf).astype(f32))

    q = mm(x.reshape(B * N, -1), params.w_q).astype(bf)
    kv = mm(ctx.reshape(B * M, -1), params.w_kv).astype(bf)
    k, v = jnp.split(kv, 2, axis=-1)
    q = q.reshape(B, N, h, d).transpose(0, 2, 1, 3).astype(f32)
    k = k.reshape(B, M, h, d).transpose(0, 2, 1, 3).astype(f32)
    v = v.reshape(B, M, h, d).transpose(0, 2, 1, 3).astype(f32)
    s = jnp.einsum("bhnd,bhmd->bhnm", q, k) * params.scale
    mx = jnp.max(s, axis=-1, keepdims=True)
    p = jnp.exp((s - mx).astype(exp_dtype)).astype(f32)
    p = p / jnp.sum(p, axis=-1, keepdims=True)
    o = jnp.einsum("bhnm,bhmd->bhnd", p.astype(bf).astype(f32), v)
    o = o.transpose(0, 2, 1, 3).reshape(B * N, h * d)
    out = mm(o.astype(bf), params.w_out)
    return out.reshape(B, N, -1).astype(x.dtype)


# ---------------------------------------------------------------------------
# Main
# ---------------------------------------------------------------------------

if __name__ == "__main__":
    key = jax.random.PRNGKey(0)
    kx, kc, kp = jax.random.split(key, 3)

    # small shapes consistent with the module
    B, N, DIM = 2, 8, 32
    HEADS, DIM_HEAD = 4, 16
    M_CTX = 8

    params = AttentionParams(kp, dim=DIM, dim_head=DIM_HEAD, heads=HEADS)

    x = jax.random.normal(kx, (B, N, DIM), jnp.float32)
    context = jax.random.normal(kc, (B, M_CTX, DIM), jnp.float32)

    # self-attention path (context=None)
    out_self = jax.block_until_ready(attention_forward(params, x))
    # cross-attention path
    out_cross = jax.block_until_ready(attention_forward(params, x, context=context))
    # cross-attention with queries included in the context
    out_incl = jax.block_until_ready(
        attention_forward(params, x, context=context, cross_attn_include_queries=True))

    ref_self = reference_forward(params, x, exp_dtype=_EXP_DTYPE)
    ref_cross = reference_forward(params, x, context=context, exp_dtype=_EXP_DTYPE)
    ref_incl = reference_forward(params, x, context=context,
                                 cross_attn_include_queries=True,
                                 exp_dtype=_EXP_DTYPE)

    assert out_self.shape == (B, N, DIM)
    assert out_cross.shape == (B, N, DIM)
    assert out_incl.shape == (B, N, DIM)
    assert jnp.allclose(out_self, ref_self, atol=2e-2, rtol=2e-2)
    assert jnp.allclose(out_cross, ref_cross, atol=2e-2, rtol=2e-2)
    assert jnp.allclose(out_incl, ref_incl, atol=2e-2, rtol=2e-2)

    print("KERNEL_OK")
</pallas_src>

<mosaic_0001>
module attributes {stable_mosaic.version = 11 : i64} {
  func.func @_matmul_kernel_full_k(%arg0: i32, %arg1: i32, %arg2: memref<16x32xbf16, #tpu.memory_space<vmem>>, %arg3: memref<32x64xbf16, #tpu.memory_space<vmem>>, %arg4: memref<16x64xbf16, #tpu.memory_space<vmem>>) attributes {dimension_semantics = [#tpu.dimension_semantics<parallel>, #tpu.dimension_semantics<parallel>], iteration_bounds = array<i64: 1, 1>, scalar_prefetch = 0 : i64, scratch_operands = 0 : i64, tpu.core_type = #tpu.core_type<tc>, window_params = [{transform_indices = @transform_0, window_bounds = array<i64: 16, 32>}, {transform_indices = @transform_1, window_bounds = array<i64: 32, 64>}, {transform_indices = @transform_2, window_bounds = array<i64: 16, 64>}]} {
    %c0 = arith.constant 0 : index
    %c0_0 = arith.constant 0 : index
    %0 = vector.load %arg2[%c0, %c0_0] : memref<16x32xbf16, #tpu.memory_space<vmem>>, vector<16x32xbf16>
    %c0_1 = arith.constant 0 : index
    %c0_2 = arith.constant 0 : index
    %1 = vector.load %arg3[%c0_1, %c0_2] : memref<32x64xbf16, #tpu.memory_space<vmem>>, vector<32x64xbf16>
    %cst = arith.constant dense<0.000000e+00> : vector<16x64xf32>
    %2 = tpu.matmul %0, %1, %cst {dimension_numbers = #tpu.dot_dimension_numbers<[1], [0], [0], [1], [0, 0, 1, 1], [], []>} : vector<16x32xbf16>, vector<32x64xbf16>, vector<16x64xf32> -> vector<16x64xf32>
    %3 = arith.truncf %2 : vector<16x64xf32> to vector<16x64xbf16>
    %c0_3 = arith.constant 0 : index
    %c0_4 = arith.constant 0 : index
    %4 = vector.load %arg4[%c0_3, %c0_4] : memref<16x64xbf16, #tpu.memory_space<vmem>>, vector<16x64xbf16>
    tpu.vector_store %arg4[%c0_3, %c0_4], %3 {strides = array<i32>} : memref<16x64xbf16, #tpu.memory_space<vmem>>, vector<16x64xbf16>,
    return
  }
  func.func @transform_0(%arg0: i32, %arg1: i32) -> (i32, i32) {
    %c0_i32 = arith.constant 0 : i32
    %c0_i32_0 = arith.constant 0 : i32
    return %arg0, %c0_i32 : i32, i32
  }
  func.func @transform_1(%arg0: i32, %arg1: i32) -> (i32, i32) {
    %c0_i32 = arith.constant 0 : i32
    %c0_i32_0 = arith.constant 0 : i32
    return %c0_i32, %arg1 : i32, i32
  }
  func.func @transform_2(%arg0: i32, %arg1: i32) -> (i32, i32) {
    %c0_i32 = arith.constant 0 : i32
    return %arg0, %arg1 : i32, i32
  }
}

</mosaic_0001>

<llo_original>
// kernel: tpu_custom_call.1
$region0: #{tpu_custom_call.1}
  #allocation0 [shape = 'u32[]', space=smem, size = 0x4, offset = 0x4, fixed_abs, tag = 'smem constant byte address 0x4 - core index']
  #allocation1 [shape = 'u32[72,128]{1,0:T(1,128)}', space=vmem, size = 0x9000, scoped, tag = 'internal scratch']
  %s0 = inlined_call_operand.hbm [shape: bf16[16,32], index: 0, kind: input, shape index: {}]
  %s1 = inlined_call_operand.hbm [shape: bf16[32,64], index: 1, kind: input, shape index: {}]
  %s2 = inlined_call_operand.hbm [shape: bf16[16,64], index: 2, kind: output, shape index: {}]
  %s3 = sld [smem:[#allocation0]]
  $region26: #{tpu_custom_call.1} parent=0
    _
  %s5 = ssub.s32 1, %s3
  %s6 = scalar_select 0, %s5, %s3
  $region1: #{tpu_custom_call.1} parent=0
    #allocation2 [shape = 'u8[4096]{0}', space=vmem, size = 0x1000, scoped, tag = 'input window, operand 0, single buffered']
    #allocation3 [shape = 's32[1]{0}', space=sflag, size = 0x4, scoped, tag = 'scoped memory for tpu_custom_call.1']
    #allocation4 [shape = 's32[1]{0}', space=sflag, size = 0x4, scoped, tag = 'scoped memory for tpu_custom_call.1']
    #allocation5 [shape = 'u8[8192]{0}', space=vmem, size = 0x2000, scoped, tag = 'input window, operand 1, single buffered']
    #allocation6 [shape = 's32[1]{0}', space=sflag, size = 0x4, scoped, tag = 'scoped memory for tpu_custom_call.1']
    #allocation7 [shape = 'u8[4096]{0}', space=vmem, size = 0x1000, scoped, tag = 'output window, operand 0, single buffered']
    %7 = vsyncpa [#allocation3], 0
    %8 = vsyncpa [#allocation6], 0
    %9 = vsyncpa [#allocation4], 0
    // Predicated region
    $region2: #{tpu_custom_call.1} parent=1 // pred_check
      _
    $region3: #{tpu_custom_call.1} parent=1 // pred_check_branch
      %11 = sbr.rel (0) target = $region5
    $region4: #{tpu_custom_call.1} parent=1 // pred_region
      %13 = vsyncadd [#allocation3], 0
      %s14 = sshll.u32 %s0, 4
      %s15 = int_to_ptr.hbm [resolvable:$true] %s14
      %s16 = sshll.u32 [#allocation2], 4
      %s17 = int_to_ptr.vmem [resolvable:$true] %s16
      %22 = dma.hbm_to_vmem [thread:$0]  %s15, 128, %s17, [#allocation3], 64, 64, 4
    $region5: #{tpu_custom_call.1} parent=1 // pred_fallthru
      _
    // Predicated region
    $region6: #{tpu_custom_call.1} parent=1 // pred_check
      _
    $region7: #{tpu_custom_call.1} parent=1 // pred_check_branch
      %24 = sbr.rel (0) target = $region9
    $region8: #{tpu_custom_call.1} parent=1 // pred_region
      %26 = vsyncadd [#allocation6], 0
      %s27 = sshll.u32 %s1, 4
      %s28 = int_to_ptr.hbm [resolvable:$true] %s27
      %s29 = sshll.u32 [#allocation5], 4
      %s30 = int_to_ptr.vmem [resolvable:$true] %s29
      %35 = dma.hbm_to_vmem [thread:$0]  %s28, 256, %s30, [#allocation6], 64, 64, 4
    $region9: #{tpu_custom_call.1} parent=1 // pred_fallthru
      _
    // Predicated region
    $region10: #{tpu_custom_call.1} parent=1 // pred_check
      _
    $region11: #{tpu_custom_call.1} parent=1 // pred_check_branch
      %37 = sbr.rel (0) target = $region13
    $region12: #{tpu_custom_call.1} parent=1 // pred_region
      %39 = dma.done [#allocation3], 128
    $region13: #{tpu_custom_call.1} parent=1 // pred_fallthru
      _
    // Predicated region
    $region14: #{tpu_custom_call.1} parent=1 // pred_check
      _
    $region15: #{tpu_custom_call.1} parent=1 // pred_check_branch
      %41 = sbr.rel (0) target = $region17
    $region16: #{tpu_custom_call.1} parent=1 // pred_region
      %43 = dma.done [#allocation6], 256
    $region17: #{tpu_custom_call.1} parent=1 // pred_fallthru
      _
    %v45 = vld [vmem:[#allocation2] sm:$0xf]
    %v46 = vld [vmem:[#allocation2 + $0x4] sm:$0xf]
    %v47 = vld [vmem:[#allocation5] sm:$0xf]
    %v48 = vld [vmem:[#allocation5 + $0x4] sm:$0xf]
    %v49 = vld [vmem:[#allocation5 + $0x8] sm:$0xf]
    %v50 = vld [vmem:[#allocation5 + $0xc] sm:$0xf]
    %v53 = vunpack.c.l.b16 %v45
    %v54 = vunpack.c.l.b16 %v46
    %v55 = vpack.c.b16 %v54, %v53
    %v60 = vunpack.c.l.b16 %v47
    %v61 = vunpack.c.l.b16 %v48
    %v62 = vunpack.c.l.b16 %v49
    %v63 = vunpack.c.l.b16 %v50
    %v64 = vpack.c.b16 %v61, %v60
    %v65 = vpack.c.b16 %v63, %v62
    %vm68 = vcmask 261120
    %v70 = vsel %vm68, %v55, 0
    %72 = vmatpush.bf16.msra.mxu0 0
    %73 = vmatpush.bf16.msra.mxu0 0
    %74 = vmatpush.bf16.msra.mxu0 0
    %75 = vmatpush.bf16.msra.mxu0 0
    %76 = vmatpush.bf16.msra.mxu0 0
    %77 = vmatpush.bf16.msra.mxu0 0
    %78 = vmatpush.bf16.msra.mxu0 %v65
    %79 = vmatpush.bf16.msra.mxu0 %v64
    %80 = vmatmul.bf16.gmra.mxu0 %v70
    %v81 = vpop.f32.mrf.mxu0
    %v82 = vadd.f32 0.0, %v81
    %v83 = vpop.f32.mrf.mxu0
    %v84 = vadd.f32 0.0, %v83
    %85 = vdwg.mxu0
    %v86 = vpack.c.bf16 %v82, %v82
    %v87 = vpack.c.bf16 %v84, %v84
    %vm88 = vcmask 519168
    %89 = vst.msk [vmem:[#allocation7] sm:$0xf] %vm88, %v86
    %90 = vst.msk [vmem:[#allocation7 + $0x4] sm:$0xf] %vm88, %v87
    // Predicated region
    $region18: #{tpu_custom_call.1} parent=1 // pred_check
      _
    $region19: #{tpu_custom_call.1} parent=1 // pred_check_branch
      %92 = sbr.rel (0) target = $region21
    $region20: #{tpu_custom_call.1} parent=1 // pred_region
      %94 = vsyncadd [#allocation4], 0
      %s95 = sshll.u32 [#allocation7], 4
      %s96 = int_to_ptr.vmem [resolvable:$true] %s95
      %s97 = sshll.u32 %s2, 4
      %s98 = int_to_ptr.hbm [resolvable:$true] %s97
      %103 = dma.vmem_to_hbm [thread:$0]  %s96, 128, %s98, [#allocation4], 64, 64, 4
    $region21: #{tpu_custom_call.1} parent=1 // pred_fallthru
      _
    // Predicated region
    $region22: #{tpu_custom_call.1} parent=1 // pred_check
      _
    $region23: #{tpu_custom_call.1} parent=1 // pred_check_branch
      %105 = sbr.rel (0) target = $region25
    $region24: #{tpu_custom_call.1} parent=1 // pred_region
      %107 = dma.done [#allocation4], 128
    $region25: #{tpu_custom_call.1} parent=1 // pred_fallthru
      _
    %108 = vsyncpa [#allocation3], 1
    %109 = vsyncpa [#allocation6], 1
    %110 = vsyncpa [#allocation4], 1

</llo_original>
